<compile_context>
chip_gen: v7x
topology: tpu7x:2x2x1
jax: 0.10.0
libtpu: 0.0.40
codegen_flags: <defaults>
</compile_context>

<pallas_src>
import functools

import jax
import jax.numpy as jnp
from jax.experimental import pallas as pl
from jax.experimental.pallas import tpu as pltpu


_MIN_PIPELINE_STEPS = 8  # aim for >= 8 grid steps (>= 4 per TensorCore on v7x)


def _shuffle_kernel(x_ref, o_ref, *, groups: int):
    # x_ref / o_ref: (1, C, T) VMEM tiles with T lane-dense.
    # out channel j*groups + g  <-  in channel g*cpg + j
    _, c, t = x_ref.shape
    cpg = c // groups
    v = x_ref[...].reshape(groups, cpg, t)
    v = jnp.swapaxes(v, 0, 1)          # sublane-slab relayout; lanes untouched
    o_ref[...] = v.reshape(1, c, t)


def _vmem_capacity_bytes() -> int:
    try:
        return int(pltpu.get_tpu_info().vmem_capacity_bytes)
    except Exception:
        return 64 * 1024 * 1024  # conservative fallback: v7x per-core VMEM


def _ceil_div(a: int, b: int) -> int:
    return -(-a // b)


def _pick_hw_tile(n: int, c: int, hw: int, itemsize: int,
                  max_block_bytes: int) -> int:
    """Pick the lane-dim (H*W) tile.

    Multiple of 128 (or the full extent), capped so a block fits the VMEM
    budget, small enough that the grid has >= ~_MIN_PIPELINE_STEPS steps, and
    preferring exact divisors of hw so no masked remainder tile is emitted.
    """
    if hw <= 128:
        # TODO(synk): small-spatial (e.g. 7x7) stages are better fused into a
        # neighbouring kernel's index_map than run as a standalone pass.
        return hw

    # Byte cap per live block.
    cap_elems = max(128, (max_block_bytes // (c * itemsize)) // 128 * 128)

    # Minimum pipeline depth: want ~_MIN_PIPELINE_STEPS total grid steps,
    # but never tiles narrower than 128 lanes.
    want_hw_steps = min(max(1, _ceil_div(_MIN_PIPELINE_STEPS, n)), hw // 128)
    depth_limit = max(128, (hw // want_hw_steps) // 128 * 128)

    limit = min(cap_elems, depth_limit)

    # Largest multiple of 128 <= limit that divides hw (no masked remainder).
    t = limit
    while t >= 128:
        if hw % t == 0:
            return t
        t -= 128

    # No 128-aligned divisor of hw: take the whole extent if it fits the byte
    # cap (block dim == full array dim is always layout-legal), otherwise
    # accept a masked remainder tile on the last spatial step.
    if c * hw * itemsize <= max_block_bytes:
        return hw
    return limit


def channel_shuffle(x: jax.Array, groups: int) -> jax.Array:
    """ChannelShuffle forward, NCHW layout (matches the PyTorch module)."""
    n, c, h, w = x.shape
    assert c % groups == 0, "channels must be divisible by groups"

    hw = h * w
    itemsize = jnp.dtype(x.dtype).itemsize

    # Generation-aware block cap: ~1/8 of per-core VMEM, clamped to [4, 16] MiB
    # (v7x: 64 MiB VMEM -> 8 MiB blocks; v5e/v6e: 128 MiB -> 16 MiB blocks).
    vmem_cap = _vmem_capacity_bytes()
    max_block_bytes = min(16 << 20, max(4 << 20, vmem_cap // 8))

    hw_tile = _pick_hw_tile(n, c, hw, itemsize, max_block_bytes)
    grid_hw = pl.cdiv(hw, hw_tile)

    # VMEM budget: in + out double-buffered (4 block-sized buffers) plus
    # relayout temps, with slack for Mosaic internal scratch.
    block_bytes = c * hw_tile * itemsize
    vmem_needed = 6 * block_bytes + (2 << 20)
    vmem_ceiling = max(vmem_cap - (8 << 20), 16 << 20)
    if vmem_needed > vmem_ceiling:
        # TODO(synk): add channels-per-group tiling for very large C instead
        # of failing; the hw_tile=128 floor alone cannot bound the block then.
        raise ValueError(
            f"ChannelShuffle block ({block_bytes} B, C={c}, hw_tile={hw_tile}) "
            f"exceeds the VMEM budget ({vmem_ceiling} B) on this chip."
        )
    vmem_limit = int(min(vmem_ceiling, max(vmem_needed, 32 << 20)))

    # Lane-dense view: (N, C, H*W).  Reshape back at the end (free).
    x3 = x.reshape(n, c, hw)

    kernel = functools.partial(_shuffle_kernel, groups=groups)

    out3 = pl.pallas_call(
        kernel,
        out_shape=jax.ShapeDtypeStruct((n, c, hw), x.dtype),
        grid=(n, grid_hw),
        in_specs=[pl.BlockSpec((1, c, hw_tile), lambda i, s: (i, 0, s))],
        out_specs=pl.BlockSpec((1, c, hw_tile), lambda i, s: (i, 0, s)),
        compiler_params=pltpu.CompilerParams(
            # Independent copies on both axes -> shard across both v7x cores.
            dimension_semantics=("parallel", "parallel"),
            vmem_limit_bytes=vmem_limit,
        ),
    )(x3)

    return out3.reshape(n, c, h, w)


def channel_shuffle_ref(x: jax.Array, groups: int) -> jax.Array:
    """Pure-JAX reference mirroring the PyTorch view/transpose/view."""
    n, c, h, w = x.shape
    y = x.reshape(n, groups, c // groups, h, w)
    y = jnp.swapaxes(y, 1, 2)
    return y.reshape(n, c, h, w)


if __name__ == "__main__":
    key = jax.random.PRNGKey(0)

    # Primary config (matches the module's expected small shapes).
    n, c, h, w = 2, 4, 16, 16
    groups = 2
    x = jax.random.normal(key, (n, c, h, w), dtype=jnp.float32)

    out = jax.block_until_ready(channel_shuffle(x, groups))
    ref = channel_shuffle_ref(x, groups)
    assert out.shape == (n, c, h, w)
    assert jnp.array_equal(out, ref), "Pallas ChannelShuffle mismatch vs reference"

    # Robustness config: groups=3 (cpg not sublane-aligned), H*W not a
    # multiple of 128, single image (exercises the fallback tiling paths).
    x2 = jax.random.normal(jax.random.PRNGKey(0), (1, 6, 14, 14), dtype=jnp.float32)
    out2 = jax.block_until_ready(channel_shuffle(x2, 3))
    assert jnp.array_equal(out2, channel_shuffle_ref(x2, 3)), (
        "Pallas ChannelShuffle mismatch vs reference (groups=3, 14x14)")

    print("KERNEL_OK")
</pallas_src>

<mosaic_0001>
module attributes {stable_mosaic.version = 11 : i64} {
  func.func @_shuffle_kernel(%arg0: i32, %arg1: i32, %arg2: memref<1x4x128xf32, #tpu.memory_space<vmem>>, %arg3: memref<1x4x128xf32, #tpu.memory_space<vmem>>) attributes {dimension_semantics = [#tpu.dimension_semantics<parallel>, #tpu.dimension_semantics<parallel>], iteration_bounds = array<i64: 2, 2>, scalar_prefetch = 0 : i64, scratch_operands = 0 : i64, tpu.core_type = #tpu.core_type<tc>, window_params = [{transform_indices = @transform_0, window_bounds = array<i64: 1, 4, 128>}, {transform_indices = @transform_1, window_bounds = array<i64: 1, 4, 128>}]} {
    %c0 = arith.constant 0 : index
    %c0_0 = arith.constant 0 : index
    %c0_1 = arith.constant 0 : index
    %0 = vector.load %arg2[%c0, %c0_0, %c0_1] : memref<1x4x128xf32, #tpu.memory_space<vmem>>, vector<1x4x128xf32>
    %1 = vector.shape_cast %0 : vector<1x4x128xf32> to vector<2x2x128xf32>
    %2 = tpu.transpose %1, [1, 0, 2] : vector<2x2x128xf32> -> vector<2x2x128xf32>
    %3 = vector.shape_cast %2 : vector<2x2x128xf32> to vector<1x4x128xf32>
    %c0_2 = arith.constant 0 : index
    %c0_3 = arith.constant 0 : index
    %c0_4 = arith.constant 0 : index
    %4 = vector.load %arg3[%c0_2, %c0_3, %c0_4] : memref<1x4x128xf32, #tpu.memory_space<vmem>>, vector<1x4x128xf32>
    tpu.vector_store %arg3[%c0_2, %c0_3, %c0_4], %3 {strides = array<i32>} : memref<1x4x128xf32, #tpu.memory_space<vmem>>, vector<1x4x128xf32>,
    return
  }
  func.func @transform_0(%arg0: i32, %arg1: i32) -> (i32, i32, i32) {
    %c0_i32 = arith.constant 0 : i32
    %c0_i32_0 = arith.constant 0 : i32
    return %arg0, %c0_i32, %arg1 : i32, i32, i32
  }
  func.func @transform_1(%arg0: i32, %arg1: i32) -> (i32, i32, i32) {
    %c0_i32 = arith.constant 0 : i32
    %c0_i32_0 = arith.constant 0 : i32
    return %arg0, %c0_i32, %arg1 : i32, i32, i32
  }
}

</mosaic_0001>

<llo_original>
// kernel: tpu_custom_call.1
$region0: #{tpu_custom_call.1}
  #allocation0 [shape = 'u32[]', space=smem, size = 0x4, offset = 0x4, fixed_abs, tag = 'smem constant byte address 0x4 - core index']
  #allocation1 [shape = 'u32[144,128]{1,0:T(1,128)}', space=vmem, size = 0x12000, scoped, tag = 'internal scratch']
  %s0 = inlined_call_operand.hbm [shape: f32[2,4,256], index: 0, kind: input, shape index: {}]
  %s1 = inlined_call_operand.hbm [shape: f32[2,4,256], index: 1, kind: output, shape index: {}]
  %s2 = sld [smem:[#allocation0]]
  $region41: #{tpu_custom_call.1} parent=0
    _
  %s4 = ssub.s32 1, %s2
  %s5 = scalar_select 0, %s4, %s2
  $region1: #{tpu_custom_call.1} parent=0
    #allocation2 [shape = 'u8[4096]{0}', space=vmem, size = 0x1000, scoped, tag = 'input window, operand 0']
    #allocation3 [shape = 's32[2]{0}', space=sflag, size = 0x8, scoped, tag = 'scoped memory for tpu_custom_call.1']
    #allocation4 [shape = 's32[2]{0}', space=sflag, size = 0x8, scoped, tag = 'scoped memory for tpu_custom_call.1']
    #allocation5 [shape = 'u8[4096]{0}', space=vmem, size = 0x1000, scoped, tag = 'output window, operand 0']
    %6 = vsyncpa [#allocation3], 0
    %s7 = scalar_lea.sflag [#allocation3], 1
    %8 = vsyncpa %s7, 0
    %9 = vsyncpa [#allocation4], 0
    %s10 = scalar_lea.sflag [#allocation4], 1
    %11 = vsyncpa %s10, 0
    loop: start=0, step=1, limit=6
    $region2: #{tpu_custom_call.1} parent=1 // loop_pre_header
      _
    $region3: #{tpu_custom_call.1} parent=1 // loop_header
      %s13 = sphi 0, %s17
      %p14 = scmp.ge.s32.totalorder %s13, 6
      %s20 = sphi 0, %s32
      %s21 = sphi 0, %s28
      %s22 = sphi 0, %s20
      %s23 = sphi 0, %s21
      %s24 = sphi 0, %s22
      %s25 = sphi 0, %s23
      %s37 = sphi 0, %s39
      %s40 = sphi 0, %s37
      %s41 = sphi 0, %s40
      %s57 = sphi 0, %s41
      %s65 = sphi 0, %s67
      %s68 = sphi 0, %s65
      %s69 = sphi 0, %s68
      %s85 = sphi 0, %s69
    $region4: #{tpu_custom_call.1} parent=1 // loop_header_branch
      %16 = sbr.rel (%p14) target = $region8
    $region5: #{tpu_custom_call.1} parent=1 // loop_body
      %s18 = ssub.s32 %s13, 1
      %s19 = ssub.s32 %s13, 2
      %s26 = sadd.s32 1, %s21
      %p27 = scmp.ge.s32.totalorder %s26, 2
      %s28 = scalar_select %p27, 0, %s26
      %s29 = sadd.s32 1, %s20
      %s30 = scalar_select %p27, %s29, %s20
      %p31 = scmp.ge.s32.totalorder %s30, 2
      %s32 = scalar_select %p31, 0, %s30
      %s33 = ssub.s32 %s20, %s32
      %s34 = ssub.s32 %s21, %s28
      %s35 = sor.u32 %s33, %s34
      %p36 = scmp.eq.s32.totalorder %s35, 0
      %s38 = sadd.s32 %s37, 1
      %s39 = scalar_select %p36, %s37, %s38
      %p42 = pneg %p36
      %p43 = scmp.eq.s32.totalorder %s13, 3
      %p44 = por %p42, %p43
      %p45 = scmp.ne.s32.totalorder %s37, %s40
      %p46 = scmp.eq.s32.totalorder %s13, 0
      %p47 = por %p45, %p46
      %p48 = scmp.ne.s32.totalorder %s37, %s40
      %p49 = scmp.eq.s32.totalorder %s18, 3
      %p50 = por %p48, %p49
      %p51 = scmp.ne.s32.totalorder %s40, %s41
      %p52 = scmp.eq.s32.totalorder %s18, 0
      %p53 = por %p51, %p52
      %p54 = scmp.ne.s32.totalorder %s40, %s41
      %p55 = scmp.eq.s32.totalorder %s19, 3
      %p56 = por %p54, %p55
      %p58 = scmp.ne.s32.totalorder %s41, %s57
      %p59 = scmp.eq.s32.totalorder %s19, 0
      %p60 = por %p58, %p59
      %s61 = ssub.s32 %s20, %s32
      %s62 = ssub.s32 %s21, %s28
      %s63 = sor.u32 %s61, %s62
      %p64 = scmp.eq.s32.totalorder %s63, 0
      %s66 = sadd.s32 %s65, 1
      %s67 = scalar_select %p64, %s65, %s66
      %p70 = pneg %p64
      %p71 = scmp.eq.s32.totalorder %s13, 3
      %p72 = por %p70, %p71
      %p73 = scmp.ne.s32.totalorder %s65, %s68
      %p74 = scmp.eq.s32.totalorder %s13, 0
      %p75 = por %p73, %p74
      %p76 = scmp.ne.s32.totalorder %s65, %s68
      %p77 = scmp.eq.s32.totalorder %s18, 3
      %p78 = por %p76, %p77
      %p79 = scmp.ne.s32.totalorder %s68, %s69
      %p80 = scmp.eq.s32.totalorder %s18, 0
      %p81 = por %p79, %p80
      %p82 = scmp.ne.s32.totalorder %s68, %s69
      %p83 = scmp.eq.s32.totalorder %s19, 3
      %p84 = por %p82, %p83
      %p86 = scmp.ne.s32.totalorder %s69, %s85
      %p87 = scmp.eq.s32.totalorder %s19, 0
      %p88 = por %p86, %p87
      %p89 = scmp.le.s32.totalorder 1, %s13
      %p90 = scmp.lt.s32.totalorder %s13, 5
      %p91 = pnand %p89, %p90
      %p92 = pneg %p91
      // Predicated region
      $region9: #{tpu_custom_call.1} parent=5 // pred_check
        _
      $region10: #{tpu_custom_call.1} parent=5 // pred_check_branch
        %94 = sbr.rel (%p91) target = $region12
      $region11: #{tpu_custom_call.1} parent=5 // pred_region
        %s95 = ssub.s32 %s13, 1
      $region12: #{tpu_custom_call.1} parent=5 // pred_fallthru
        _
      %p96 = scmp.lt.s32.totalorder %s13, 4
      // Predicated region
      $region13: #{tpu_custom_call.1} parent=5 // pred_check
        %p97 = pneg %p96
      $region14: #{tpu_custom_call.1} parent=5 // pred_check_branch
        %99 = sbr.rel (%p97) target = $region16
      $region15: #{tpu_custom_call.1} parent=5 // pred_region
        // Predicated region
        $region17: #{tpu_custom_call.1} parent=15 // pred_check
          %p100 = pneg %p47
        $region18: #{tpu_custom_call.1} parent=15 // pred_check_branch
          %102 = sbr.rel (%p100) target = $region20
        $region19: #{tpu_custom_call.1} parent=15 // pred_region
          %s103 = sand.u32 %s37, 1
          %s104 = scalar_lea.sflag [#allocation3], %s103
          %s105 = sand.u32 %s37, 1
          %s106 = smul.addr %s105, 4
          %s107 = scalar_lea.vmem [#allocation2], %s106
          %s109 = ssub.s32 64, 64
          %110 = vsyncadd %s104, %s109
          %s111 = smul.addr %s20, 2
          %s112 = sadd.s32 %s21, %s111
          %s113 = smul.addr %s112, 64
          %s114 = scalar_lea.hbm %s0, %s113
          %s116 = sshll.u32 %s107, 4
          %s117 = int_to_ptr.vmem [resolvable:$true] %s116
          %119 = dma.hbm_to_vmem [thread:$0]  %s114, 64, %s117, %s104
        $region20: #{tpu_custom_call.1} parent=15 // pred_fallthru
          _
      $region16: #{tpu_custom_call.1} parent=5 // pred_fallthru
        _
      %p120 = scmp.le.s32.totalorder 1, %s13
      %p121 = scmp.lt.s32.totalorder %s13, 5
      %p122 = pnand %p120, %p121
      %p123 = pneg %p122
      // Predicated region
      $region21: #{tpu_custom_call.1} parent=5 // pred_check
        _
      $region22: #{tpu_custom_call.1} parent=5 // pred_check_branch
        %125 = sbr.rel (%p122) target = $region24
      $region23: #{tpu_custom_call.1} parent=5 // pred_region
        %s126 = ssub.s32 %s13, 1
        %s127 = sand.u32 %s40, 1
        %s128 = scalar_lea.sflag [#allocation3], %s127
        %s129 = sand.u32 %s40, 1
        %s130 = smul.addr %s129, 4
        %s131 = scalar_lea.vmem [#allocation2], %s130
        // Predicated region
        $region25: #{tpu_custom_call.1} parent=23 // pred_check
          %p132 = pneg %p53
        $region26: #{tpu_custom_call.1} parent=23 // pred_check_branch
          %134 = sbr.rel (%p132) target = $region28
        $region27: #{tpu_custom_call.1} parent=23 // pred_region
          %135 = dma.done %s128, 64
        $region28: #{tpu_custom_call.1} parent=23 // pred_fallthru
          _
        %s136 = sand.u32 %s40, 1
        %s137 = scalar_lea.sflag [#allocation3], %s136
        %s138 = sand.u32 %s40, 1
        %s139 = smul.addr %s138, 4
        %s140 = scalar_lea.vmem [#allocation2], %s139
        %p141 = pneg %p53
        %p142 = pneg %p50
        %p143 = pneg %p81
        %p144 = pneg %p78
        %s145 = sand.u32 %s68, 1
        %s146 = scalar_lea.sflag [#allocation4], %s145
        %s147 = sand.u32 %s68, 1
        %s148 = smul.addr %s147, 4
        %s149 = scalar_lea.vmem [#allocation5], %s148
        %v150 = vld [vmem:[%s131] sm:$0xf]
        %v153 = vunpack.c.l.s4 1983009808
        %v154 = vunpack.c.0.s8 %v153
        %v155 = vlaneseq
        %v156 = vshrl.u32 %v155, 7
        %v157 = vsub.s32 %v154, %v156
        %v158 = vrot.slane %v150, %v157
        %v159 = vcombine.high %v158, %v158
        %v162 = vcombine.low %v158, %v159
        %v164 = vunpack.c.l.s4 1934713408
        %v165 = vunpack.c.0.s8 %v164
        %v166 = vlaneseq
        %v167 = vshrl.u32 %v166, 7
        %v168 = vsub.s32 %v165, %v167
        %v169 = vrot.slane %v162, %v168
        %v170 = vcombine.high %v169, 0.0
        %v173 = vcombine.low %v169, %v170
        %v175 = vunpack.c.l.s4 1983009808
        %v176 = vunpack.c.0.s8 %v175
        %v177 = vlaneseq
        %v178 = vshrl.u32 %v177, 7
        %v179 = vsub.s32 %v176, %v178
        %v180 = vrot.slane %v173, %v179
        %182 = vst [vmem:[%s149] sm:$0xf] %v180
        %s183 = sand.u32 %s68, 1
        %s184 = scalar_lea.sflag [#allocation4], %s183
        %s185 = sand.u32 %s68, 1
        %s186 = smul.addr %s185, 4
        %s187 = scalar_lea.vmem [#allocation5], %s186
        // Predicated region
        $region29: #{tpu_custom_call.1} parent=23 // pred_check
          %p188 = pneg %p78
        $region30: #{tpu_custom_call.1} parent=23 // pred_check_branch
          %190 = sbr.rel (%p188) target = $region32
        $region31: #{tpu_custom_call.1} parent=23 // pred_region
          %s192 = ssub.s32 64, 64
          %193 = vsyncadd %s184, %s192
          %s194 = smul.addr %s22, 2
          %s195 = sadd.s32 %s23, %s194
          %s196 = smul.addr %s195, 64
          %s197 = scalar_lea.hbm %s1, %s196
          %s199 = sshll.u32 %s187, 4
          %s200 = int_to_ptr.vmem [resolvable:$true] %s199
          %202 = dma.vmem_to_hbm [thread:$0]  %s200, 64, %s197, %s184
        $region32: #{tpu_custom_call.1} parent=23 // pred_fallthru
          _
      $region24: #{tpu_custom_call.1} parent=5 // pred_fallthru
        _
      %p203 = scmp.le.s32.totalorder 2, %s13
      // Predicated region
      $region33: #{tpu_custom_call.1} parent=5 // pred_check
        %p204 = pneg %p203
      $region34: #{tpu_custom_call.1} parent=5 // pred_check_branch
        %206 = sbr.rel (%p204) target = $region36
      $region35: #{tpu_custom_call.1} parent=5 // pred_region
        %s207 = ssub.s32 %s13, 2
        // Predicated region
        $region37: #{tpu_custom_call.1} parent=35 // pred_check
          %p208 = pneg %p84
        $region38: #{tpu_custom_call.1} parent=35 // pred_check_branch
          %210 = sbr.rel (%p208) target = $region40
        $region39: #{tpu_custom_call.1} parent=35 // pred_region
          %s211 = sand.u32 %s69, 1
          %s212 = scalar_lea.sflag [#allocation4], %s211
          %s213 = sand.u32 %s69, 1
          %s214 = smul.addr %s213, 4
          %s215 = scalar_lea.vmem [#allocation5], %s214
          %216 = dma.done %s212, 64
        $region40: #{tpu_custom_call.1} parent=35 // pred_fallthru
          _
      $region36: #{tpu_custom_call.1} parent=5 // pred_fallthru
        _
    $region6: #{tpu_custom_call.1} parent=1 // loop_footer
      %s17 = sadd.s32 1, %s13
    $region7: #{tpu_custom_call.1} parent=1 // loop_footer_branch
      %12 = sbr.rel target = $region3
    $region8: #{tpu_custom_call.1} parent=1 // loop_exit
      _
    %217 = vsyncpa [#allocation3], 1
    %s218 = scalar_lea.sflag [#allocation3], 1
    %219 = vsyncpa %s218, 1
    %220 = vsyncpa [#allocation4], 1
    %s221 = scalar_lea.sflag [#allocation4], 1
    %222 = vsyncpa %s221, 1

</llo_original>
